<compile_context>
chip_gen: v6e
topology: v6e:2x2x1
jax: 0.10.0
libtpu: 0.0.40
codegen_flags: <defaults>
</compile_context>

<pallas_src>
import math

import jax
import jax.numpy as jnp
from jax.experimental import pallas as pl
from jax.experimental.pallas import tpu as pltpu

_LN_EPS = 1e-5
_INV_SQRT2 = 0.7071067811865475
_LANE = 128


def _round_up(x, m):
    return ((x + m - 1) // m) * m


# --------------------------------------------------------------------------- #
# Parameters
# --------------------------------------------------------------------------- #
def init_mlp_params(key, input_sizes, bias=True):
    """Deterministic init mirroring nn.Linear / nn.LayerNorm.

    Weights are stored pre-transposed as [d_in, d_out] and zero-padded so the
    output feature dim is a multiple of 128 lanes (first-layer input dim is
    kept at its real width).  Zero padding keeps the math exact.
    """
    has_norm = len(input_sizes) > 2
    params = []
    d_in_pad_prev = input_sizes[0]  # first layer consumes the raw input
    for i in range(1, len(input_sizes)):
        d_in, d_out = input_sizes[i - 1], input_sizes[i]
        d_in_pad = d_in_pad_prev
        d_out_pad = _round_up(d_out, _LANE)
        key, kw, kb = jax.random.split(key, 3)
        bound = 1.0 / math.sqrt(d_in)
        w = jax.random.uniform(kw, (d_in, d_out), jnp.float32, -bound, bound)
        b = (jax.random.uniform(kb, (d_out,), jnp.float32, -bound, bound)
             if bias else jnp.zeros((d_out,), jnp.float32))
        w_p = jnp.zeros((d_in_pad, d_out_pad), jnp.float32).at[:d_in, :d_out].set(w)
        b_p = jnp.zeros((1, d_out_pad), jnp.float32).at[0, :d_out].set(b)
        layer = {"w": w_p, "b": b_p, "d_in": d_in, "d_out": d_out}
        if has_norm and i < len(input_sizes) - 1:
            # gamma zero-padded (not one-padded) so padded lanes are zeroed by LN.
            layer["gamma"] = jnp.zeros((1, d_out_pad), jnp.float32).at[0, :d_out].set(1.0)
            layer["beta"] = jnp.zeros((1, d_out_pad), jnp.float32)
        params.append(layer)
        d_in_pad_prev = d_out_pad
    return params


# --------------------------------------------------------------------------- #
# Fused kernel
# --------------------------------------------------------------------------- #
def _build_fused_kernel(layer_meta):
    """layer_meta: tuple of (is_last, has_ln, d_out_real) per layer."""

    def kernel(x_ref, *refs):
        o_ref = refs[-1]
        prefs = refs[:-1]
        idx = 0
        y = x_ref[...]
        for is_last, has_ln, d_out in layer_meta:
            w = prefs[idx][...]
            b = prefs[idx + 1][...]          # (1, d_pad) f32, broadcasts from one row
            idx += 2
            # Linear on the MXU, f32 accumulation.
            y = jnp.dot(y.astype(w.dtype), w, preferred_element_type=jnp.float32) + b
            if not is_last:
                # Exact (erf-based) GELU, matching F.gelu default.  GELU(0)=0 keeps
                # padded lanes exactly zero.
                y = 0.5 * y * (1.0 + jax.lax.erf(y * _INV_SQRT2))
                if has_ln:
                    g = prefs[idx][...]
                    beta = prefs[idx + 1][...]
                    idx += 2
                    # LayerNorm over the *real* d_out features.  Padded lanes are
                    # exactly zero here, so lane-wide sums equal real-feature sums;
                    # single fused pass computes E[y] and E[y^2] together.
                    inv_d = 1.0 / d_out
                    s = jnp.sum(y, axis=-1, keepdims=True)
                    s2 = jnp.sum(y * y, axis=-1, keepdims=True)
                    mean = s * inv_d
                    var = s2 * inv_d - mean * mean
                    y = (y - mean) * jax.lax.rsqrt(var + _LN_EPS)
                    # gamma is zero in padded lanes -> padded lanes return to 0.
                    y = y * g + beta
        o_ref[...] = y.astype(o_ref.dtype)

    return kernel


# --------------------------------------------------------------------------- #
# Wrapper
# --------------------------------------------------------------------------- #
def mlp_apply(params, x, *, block_batch=512, compute_dtype=jnp.float32,
              vmem_limit_bytes=None):
    """Forward pass: Linear -> (GELU -> LayerNorm) for all but the last layer."""
    out_dtype = x.dtype
    B, d_in = x.shape
    assert d_in == params[0]["d_in"], (d_in, params[0]["d_in"])
    n_layers = len(params)
    d_out_real = params[-1]["d_out"]
    d_out_pad = params[-1]["w"].shape[1]

    # ---- batch tile + pad batch to a tile multiple ----
    tb = min(_round_up(B, 8), block_batch)
    b_pad = _round_up(B, tb)
    if b_pad != B:
        x = jnp.pad(x, ((0, b_pad - B), (0, 0)))
    grid = (b_pad // tb,)

    compute_dtype = jnp.dtype(compute_dtype)
    x_in = x.astype(compute_dtype)

    # ---- flatten params -> kernel args + BlockSpecs ----
    args = [x_in]
    in_specs = [pl.BlockSpec((tb, d_in), lambda i: (i, 0))]
    metas = []
    for li, layer in enumerate(params):
        is_last = li == n_layers - 1
        w = layer["w"].astype(compute_dtype)      # bf16 fast path: cast at boundary
        args.append(w)
        in_specs.append(pl.BlockSpec(w.shape, lambda i: (0, 0)))
        args.append(layer["b"])                   # bias stays f32 (f32 accumulation)
        in_specs.append(pl.BlockSpec(layer["b"].shape, lambda i: (0, 0)))
        has_ln = (not is_last) and ("gamma" in layer)
        if has_ln:
            for name in ("gamma", "beta"):
                args.append(layer[name])
                in_specs.append(pl.BlockSpec(layer[name].shape, lambda i: (0, 0)))
        metas.append((is_last, has_ln, layer["d_out"]))

    out_spec = pl.BlockSpec((tb, d_out_pad), lambda i: (i, 0))
    out_shape = jax.ShapeDtypeStruct((b_pad, d_out_pad), out_dtype)
    kernel = _build_fused_kernel(tuple(metas))

    # ---- VMEM budget: double-buffered x/out tiles + resident params ----
    if vmem_limit_bytes is None:
        itemsize = compute_dtype.itemsize
        tile_bytes = 2 * tb * (d_in * itemsize + d_out_pad * jnp.dtype(out_dtype).itemsize)
        param_bytes = sum(int(a.size) * a.dtype.itemsize for a in args[1:])
        vmem_limit_bytes = int(min(max(4 * (tile_bytes + param_bytes), 16 * 2**20),
                                   64 * 2**20))

    out = pl.pallas_call(
        kernel,
        out_shape=out_shape,
        grid_spec=pltpu.PrefetchScalarGridSpec(
            num_scalar_prefetch=0,
            grid=grid,
            in_specs=in_specs,
            out_specs=out_spec,
        ),
        compiler_params=pltpu.CompilerParams(
            dimension_semantics=("parallel",),
            vmem_limit_bytes=vmem_limit_bytes,
        ),
    )(*args)
    # slice off batch padding and lane padding (outside the kernel)
    return out[:B, :d_out_real]


# --------------------------------------------------------------------------- #
# Pure-JAX reference (uses the un-padded parameter slices)
# --------------------------------------------------------------------------- #
def _reference(params, x):
    n_layers = len(params)
    y = x
    for i, layer in enumerate(params):
        w = layer["w"][:layer["d_in"], :layer["d_out"]]
        b = layer["b"][:, :layer["d_out"]]
        y = y @ w + b
        if i < n_layers - 1:
            y = jax.nn.gelu(y, approximate=False)
            if "gamma" in layer:
                g = layer["gamma"][:, :layer["d_out"]]
                beta = layer["beta"][:, :layer["d_out"]]
                mean = jnp.mean(y, axis=-1, keepdims=True)
                var = jnp.mean((y - mean) ** 2, axis=-1, keepdims=True)
                y = (y - mean) * jax.lax.rsqrt(var + _LN_EPS) * g + beta
    return y


if __name__ == "__main__":
    key = jax.random.PRNGKey(0)
    key, kx, kp = jax.random.split(key, 3)

    # MLP([32, 64, 16]): Linear(32,64) -> GELU -> LayerNorm(64) -> Linear(64,16)
    input_sizes = [32, 64, 16]
    batch = 8
    x = jax.random.normal(kx, (batch, input_sizes[0]), jnp.float32)
    params = init_mlp_params(kp, input_sizes, bias=True)

    out = jax.block_until_ready(mlp_apply(params, x))
    ref = _reference(params, x)
    assert out.shape == (batch, input_sizes[-1]), out.shape
    assert jnp.allclose(out, ref, atol=1e-5, rtol=1e-5), \
        float(jnp.max(jnp.abs(out - ref)))

    # Gridded / batch-padded path: non-divisible batch, multiple parallel tiles.
    key, kx2 = jax.random.split(key)
    x2 = jax.random.normal(kx2, (200, input_sizes[0]), jnp.float32)
    out2 = jax.block_until_ready(mlp_apply(params, x2, block_batch=64))
    ref2 = _reference(params, x2)
    assert out2.shape == (200, input_sizes[-1]), out2.shape
    assert jnp.allclose(out2, ref2, atol=1e-5, rtol=1e-5), \
        float(jnp.max(jnp.abs(out2 - ref2)))

    # bf16 MXU fast path (f32 accumulation / f32 LayerNorm stats) — loose check.
    out_bf = jax.block_until_ready(
        mlp_apply(params, x2, block_batch=64, compute_dtype=jnp.bfloat16))
    assert out_bf.shape == (200, input_sizes[-1]), out_bf.shape
    assert float(jnp.max(jnp.abs(out_bf.astype(jnp.float32) - ref2))) < 0.1

    print("KERNEL_OK")
</pallas_src>

<mosaic_0001>
module attributes {stable_mosaic.version = 11 : i64} {
  func.func @kernel(%arg0: i32, %arg1: memref<8x32xf32, #tpu.memory_space<vmem>>, %arg2: memref<32x128xf32, #tpu.memory_space<vmem>>, %arg3: memref<1x128xf32, #tpu.memory_space<vmem>>, %arg4: memref<1x128xf32, #tpu.memory_space<vmem>>, %arg5: memref<1x128xf32, #tpu.memory_space<vmem>>, %arg6: memref<128x128xf32, #tpu.memory_space<vmem>>, %arg7: memref<1x128xf32, #tpu.memory_space<vmem>>, %arg8: memref<8x128xf32, #tpu.memory_space<vmem>>) attributes {dimension_semantics = [#tpu.dimension_semantics<parallel>], iteration_bounds = array<i64: 1>, scalar_prefetch = 0 : i64, scratch_operands = 0 : i64, tpu.core_type = #tpu.core_type<tc>, window_params = [{transform_indices = @transform_0, window_bounds = array<i64: 8, 32>}, {pipeline_mode = #tpu.pipeline_mode<synchronous>, transform_indices = @transform_1, window_bounds = array<i64: 32, 128>}, {pipeline_mode = #tpu.pipeline_mode<synchronous>, transform_indices = @transform_2, window_bounds = array<i64: 1, 128>}, {pipeline_mode = #tpu.pipeline_mode<synchronous>, transform_indices = @transform_3, window_bounds = array<i64: 1, 128>}, {pipeline_mode = #tpu.pipeline_mode<synchronous>, transform_indices = @transform_4, window_bounds = array<i64: 1, 128>}, {pipeline_mode = #tpu.pipeline_mode<synchronous>, transform_indices = @transform_5, window_bounds = array<i64: 128, 128>}, {pipeline_mode = #tpu.pipeline_mode<synchronous>, transform_indices = @transform_6, window_bounds = array<i64: 1, 128>}, {transform_indices = @transform_7, window_bounds = array<i64: 8, 128>}]} {
    %c0 = arith.constant 0 : index
    %c0_0 = arith.constant 0 : index
    %0 = vector.load %arg1[%c0, %c0_0] : memref<8x32xf32, #tpu.memory_space<vmem>>, vector<8x32xf32>
    %c0_1 = arith.constant 0 : index
    %c0_2 = arith.constant 0 : index
    %1 = vector.load %arg2[%c0_1, %c0_2] : memref<32x128xf32, #tpu.memory_space<vmem>>, vector<32x128xf32>
    %c0_3 = arith.constant 0 : index
    %c0_4 = arith.constant 0 : index
    %2 = vector.load %arg3[%c0_3, %c0_4] : memref<1x128xf32, #tpu.memory_space<vmem>>, vector<1x128xf32>
    %cst = arith.constant dense<0.000000e+00> : vector<8x128xf32>
    %3 = tpu.matmul %0, %1, %cst {dimension_numbers = #tpu.dot_dimension_numbers<[1], [0], [0], [1], [0, 0, 1, 1], [], []>} : vector<8x32xf32>, vector<32x128xf32>, vector<8x128xf32> -> vector<8x128xf32>
    %4 = vector.broadcast %2 : vector<1x128xf32> to vector<8x128xf32>
    %5 = arith.addf %3, %4 : vector<8x128xf32>
    %cst_5 = arith.constant 5.000000e-01 : f32
    %6 = vector.broadcast %cst_5 : f32 to vector<8x128xf32>
    %7 = arith.mulf %6, %5 : vector<8x128xf32>
    %cst_6 = arith.constant 0.707106769 : f32
    %8 = vector.broadcast %cst_6 : f32 to vector<8x128xf32>
    %9 = arith.mulf %5, %8 : vector<8x128xf32>
    %10 = math.erf %9 : vector<8x128xf32>
    %cst_7 = arith.constant 1.000000e+00 : f32
    %11 = vector.broadcast %cst_7 : f32 to vector<8x128xf32>
    %12 = arith.addf %11, %10 : vector<8x128xf32>
    %13 = arith.mulf %7, %12 : vector<8x128xf32>
    %c0_8 = arith.constant 0 : index
    %c0_9 = arith.constant 0 : index
    %14 = vector.load %arg4[%c0_8, %c0_9] : memref<1x128xf32, #tpu.memory_space<vmem>>, vector<1x128xf32>
    %c0_10 = arith.constant 0 : index
    %c0_11 = arith.constant 0 : index
    %15 = vector.load %arg5[%c0_10, %c0_11] : memref<1x128xf32, #tpu.memory_space<vmem>>, vector<1x128xf32>
    %cst_12 = arith.constant dense<0.000000e+00> : vector<8xf32>
    %16 = vector.multi_reduction <add>, %13, %cst_12 [1] : vector<8x128xf32> to vector<8xf32>
    %17 = vector.shape_cast %16 : vector<8xf32> to vector<8x1xf32>
    %18 = arith.mulf %13, %13 : vector<8x128xf32>
    %cst_13 = arith.constant dense<0.000000e+00> : vector<8xf32>
    %19 = vector.multi_reduction <add>, %18, %cst_13 [1] : vector<8x128xf32> to vector<8xf32>
    %20 = vector.shape_cast %19 : vector<8xf32> to vector<8x1xf32>
    %cst_14 = arith.constant 1.562500e-02 : f32
    %21 = vector.broadcast %cst_14 : f32 to vector<8x1xf32>
    %22 = arith.mulf %17, %21 : vector<8x1xf32>
    %cst_15 = arith.constant 1.562500e-02 : f32
    %23 = vector.broadcast %cst_15 : f32 to vector<8x1xf32>
    %24 = arith.mulf %20, %23 : vector<8x1xf32>
    %25 = arith.mulf %22, %22 : vector<8x1xf32>
    %26 = arith.subf %24, %25 : vector<8x1xf32>
    %27 = vector.broadcast %22 : vector<8x1xf32> to vector<8x128xf32>
    %28 = arith.subf %13, %27 : vector<8x128xf32>
    %cst_16 = arith.constant 9.99999974E-6 : f32
    %29 = vector.broadcast %cst_16 : f32 to vector<8x1xf32>
    %30 = arith.addf %26, %29 : vector<8x1xf32>
    %31 = math.rsqrt %30 : vector<8x1xf32>
    %32 = vector.broadcast %31 : vector<8x1xf32> to vector<8x128xf32>
    %33 = arith.mulf %28, %32 : vector<8x128xf32>
    %34 = vector.broadcast %14 : vector<1x128xf32> to vector<8x128xf32>
    %35 = arith.mulf %33, %34 : vector<8x128xf32>
    %36 = vector.broadcast %15 : vector<1x128xf32> to vector<8x128xf32>
    %37 = arith.addf %35, %36 : vector<8x128xf32>
    %c0_17 = arith.constant 0 : index
    %c0_18 = arith.constant 0 : index
    %38 = vector.load %arg6[%c0_17, %c0_18] : memref<128x128xf32, #tpu.memory_space<vmem>>, vector<128x128xf32>
    %c0_19 = arith.constant 0 : index
    %c0_20 = arith.constant 0 : index
    %39 = vector.load %arg7[%c0_19, %c0_20] : memref<1x128xf32, #tpu.memory_space<vmem>>, vector<1x128xf32>
    %cst_21 = arith.constant dense<0.000000e+00> : vector<8x128xf32>
    %40 = tpu.matmul %37, %38, %cst_21 {dimension_numbers = #tpu.dot_dimension_numbers<[1], [0], [0], [1], [0, 0, 1, 1], [], []>} : vector<8x128xf32>, vector<128x128xf32>, vector<8x128xf32> -> vector<8x128xf32>
    %41 = vector.broadcast %39 : vector<1x128xf32> to vector<8x128xf32>
    %42 = arith.addf %40, %41 : vector<8x128xf32>
    %c0_22 = arith.constant 0 : index
    %c0_23 = arith.constant 0 : index
    %43 = vector.load %arg8[%c0_22, %c0_23] : memref<8x128xf32, #tpu.memory_space<vmem>>, vector<8x128xf32>
    tpu.vector_store %arg8[%c0_22, %c0_23], %42 {strides = array<i32>} : memref<8x128xf32, #tpu.memory_space<vmem>>, vector<8x128xf32>,
    return
  }
  func.func @transform_0(%arg0: i32) -> (i32, i32) {
    %c0_i32 = arith.constant 0 : i32
    %c0_i32_0 = arith.constant 0 : i32
    return %arg0, %c0_i32 : i32, i32
  }
  func.func @transform_1(%arg0: i32) -> (i32, i32) {
    %c0_i32 = arith.constant 0 : i32
    %c0_i32_0 = arith.constant 0 : i32
    %c0_i32_1 = arith.constant 0 : i32
    return %c0_i32, %c0_i32_0 : i32, i32
  }
  func.func @transform_2(%arg0: i32) -> (i32, i32) {
    %c0_i32 = arith.constant 0 : i32
    %c0_i32_0 = arith.constant 0 : i32
    %c0_i32_1 = arith.constant 0 : i32
    return %c0_i32, %c0_i32_0 : i32, i32
  }
  func.func @transform_3(%arg0: i32) -> (i32, i32) {
    %c0_i32 = arith.constant 0 : i32
    %c0_i32_0 = arith.constant 0 : i32
    %c0_i32_1 = arith.constant 0 : i32
    return %c0_i32, %c0_i32_0 : i32, i32
  }
  func.func @transform_4(%arg0: i32) -> (i32, i32) {
    %c0_i32 = arith.constant 0 : i32
    %c0_i32_0 = arith.constant 0 : i32
    %c0_i32_1 = arith.constant 0 : i32
    return %c0_i32, %c0_i32_0 : i32, i32
  }
  func.func @transform_5(%arg0: i32) -> (i32, i32) {
    %c0_i32 = arith.constant 0 : i32
    %c0_i32_0 = arith.constant 0 : i32
    %c0_i32_1 = arith.constant 0 : i32
    return %c0_i32, %c0_i32_0 : i32, i32
  }
  func.func @transform_6(%arg0: i32) -> (i32, i32) {
    %c0_i32 = arith.constant 0 : i32
    %c0_i32_0 = arith.constant 0 : i32
    %c0_i32_1 = arith.constant 0 : i32
    return %c0_i32, %c0_i32_0 : i32, i32
  }
  func.func @transform_7(%arg0: i32) -> (i32, i32) {
    %c0_i32 = arith.constant 0 : i32
    %c0_i32_0 = arith.constant 0 : i32
    return %arg0, %c0_i32 : i32, i32
  }
}

</mosaic_0001>

<llo_original>
// kernel: tpu_custom_call.1
$region0: #{tpu_custom_call.1}
  #allocation0 [shape = 'u32[]', space=smem, size = 0x4, offset = 0x4, fixed_abs, tag = 'smem constant byte address 0x4 - core index']
  #allocation1 [shape = 'u32[144,128]{1,0:T(1,128)}', space=vmem, size = 0x12000, scoped, tag = 'internal scratch']
  %s0 = inlined_call_operand.hbm [shape: f32[8,32], index: 0, kind: input, shape index: {}]
  %s1 = inlined_call_operand.hbm [shape: f32[32,128], index: 1, kind: input, shape index: {}]
  %s2 = inlined_call_operand.vmem [shape: f32[1,128], index: 2, kind: input, shape index: {}]
  %s3 = inlined_call_operand.vmem [shape: f32[1,128], index: 3, kind: input, shape index: {}]
  %s4 = inlined_call_operand.vmem [shape: f32[1,128], index: 4, kind: input, shape index: {}]
  %s5 = inlined_call_operand.hbm [shape: f32[128,128], index: 5, kind: input, shape index: {}]
  %s6 = inlined_call_operand.vmem [shape: f32[1,128], index: 6, kind: input, shape index: {}]
  %s7 = inlined_call_operand.hbm [shape: f32[8,128], index: 7, kind: output, shape index: {}]
  %s8 = sld [smem:[#allocation0]]
  $region50: #{tpu_custom_call.1} parent=0
    _
  %s10 = ssub.s32 1, %s8
  %s11 = scalar_select 0, %s10, %s8
  $region1: #{tpu_custom_call.1} parent=0
    #allocation2 [shape = 'u8[4096]{0}', space=vmem, size = 0x1000, scoped, tag = 'input window, operand 0, single buffered']
    #allocation3 [shape = 's32[1]{0}', space=sflag, size = 0x4, scoped, tag = 'scoped memory for tpu_custom_call.1']
    #allocation4 [shape = 's32[1]{0}', space=sflag, size = 0x4, scoped, tag = 'scoped memory for tpu_custom_call.1']
    #allocation5 [shape = 'u8[16384]{0}', space=vmem, size = 0x4000, scoped, tag = 'input window, operand 1, single buffered']
    #allocation6 [shape = 's32[1]{0}', space=sflag, size = 0x4, scoped, tag = 'scoped memory for tpu_custom_call.1']
    #allocation7 [shape = 'u8[65536]{0}', space=vmem, size = 0x10000, scoped, tag = 'input window, operand 5, single buffered']
    #allocation8 [shape = 'u8[4096]{0}', space=vmem, size = 0x1000, scoped, tag = 'output window, operand 0, single buffered']
    %12 = vsyncpa [#allocation3], 0
    %13 = vsyncpa [#allocation6], 0
    %14 = vsyncpa [#allocation4], 0
    // Predicated region
    $region2: #{tpu_custom_call.1} parent=1 // pred_check
      _
    $region3: #{tpu_custom_call.1} parent=1 // pred_check_branch
      %16 = sbr.rel (0) target = $region5
    $region4: #{tpu_custom_call.1} parent=1 // pred_region
      %s18 = ssub.s32 128, 128
      %19 = vsyncadd [#allocation3], %s18
      %s21 = sshll.u32 [#allocation2], 4
      %s22 = int_to_ptr.vmem [resolvable:$true] %s21
      %24 = dma.hbm_to_vmem [thread:$0]  %s0, 128, %s22, [#allocation3]
    $region5: #{tpu_custom_call.1} parent=1 // pred_fallthru
      _
    // Predicated region
    $region6: #{tpu_custom_call.1} parent=1 // pred_check
      _
    $region7: #{tpu_custom_call.1} parent=1 // pred_check_branch
      %26 = sbr.rel (0) target = $region9
    $region8: #{tpu_custom_call.1} parent=1 // pred_region
      %s28 = ssub.s32 512, 512
      %29 = vsyncadd [#allocation6], %s28
      %s30 = sshll.u32 [#allocation5], 4
      %s31 = int_to_ptr.vmem [resolvable:$true] %s30
      %36 = dma.hbm_to_vmem [thread:$0]  %s1, 512, %s31, [#allocation6], 128, 128, 8
    $region9: #{tpu_custom_call.1} parent=1 // pred_fallthru
      _
    // Predicated region
    $region10: #{tpu_custom_call.1} parent=1 // pred_check
      _
    $region11: #{tpu_custom_call.1} parent=1 // pred_check_branch
      %38 = sbr.rel (0) target = $region13
    $region12: #{tpu_custom_call.1} parent=1 // pred_region
      _
    $region13: #{tpu_custom_call.1} parent=1 // pred_fallthru
      _
    // Predicated region
    $region14: #{tpu_custom_call.1} parent=1 // pred_check
      _
    $region15: #{tpu_custom_call.1} parent=1 // pred_check_branch
      %40 = sbr.rel (0) target = $region17
    $region16: #{tpu_custom_call.1} parent=1 // pred_region
      _
    $region17: #{tpu_custom_call.1} parent=1 // pred_fallthru
      _
    // Predicated region
    $region18: #{tpu_custom_call.1} parent=1 // pred_check
      _
    $region19: #{tpu_custom_call.1} parent=1 // pred_check_branch
      %42 = sbr.rel (0) target = $region21
    $region20: #{tpu_custom_call.1} parent=1 // pred_region
      _
    $region21: #{tpu_custom_call.1} parent=1 // pred_fallthru
      _
    // Predicated region
    $region22: #{tpu_custom_call.1} parent=1 // pred_check
      _
    $region23: #{tpu_custom_call.1} parent=1 // pred_check_branch
      %44 = sbr.rel (0) target = $region25
    $region24: #{tpu_custom_call.1} parent=1 // pred_region
      %s46 = ssub.s32 2048, 2048
      %47 = vsyncadd [#allocation6], %s46
      %s48 = sshll.u32 [#allocation7], 4
      %s49 = int_to_ptr.vmem [resolvable:$true] %s48
      %54 = dma.hbm_to_vmem [thread:$0]  %s5, 2048, %s49, [#allocation6], 128, 128, 8
    $region25: #{tpu_custom_call.1} parent=1 // pred_fallthru
      _
    // Predicated region
    $region26: #{tpu_custom_call.1} parent=1 // pred_check
      _
    $region27: #{tpu_custom_call.1} parent=1 // pred_check_branch
      %56 = sbr.rel (0) target = $region29
    $region28: #{tpu_custom_call.1} parent=1 // pred_region
      _
    $region29: #{tpu_custom_call.1} parent=1 // pred_fallthru
      _
    // Predicated region
    $region30: #{tpu_custom_call.1} parent=1 // pred_check
      _
    $region31: #{tpu_custom_call.1} parent=1 // pred_check_branch
      %58 = sbr.rel (0) target = $region33
    $region32: #{tpu_custom_call.1} parent=1 // pred_region
      %59 = dma.done [#allocation3], 128
    $region33: #{tpu_custom_call.1} parent=1 // pred_fallthru
      _
    // Predicated region
    $region34: #{tpu_custom_call.1} parent=1 // pred_check
      _
    $region35: #{tpu_custom_call.1} parent=1 // pred_check_branch
      %61 = sbr.rel (0) target = $region37
    $region36: #{tpu_custom_call.1} parent=1 // pred_region
      %62 = dma.done [#allocation6], 512
    $region37: #{tpu_custom_call.1} parent=1 // pred_fallthru
      _
    // Predicated region
    $region38: #{tpu_custom_call.1} parent=1 // pred_check
      _
    $region39: #{tpu_custom_call.1} parent=1 // pred_check_branch
      %64 = sbr.rel (0) target = $region41
    $region40: #{tpu_custom_call.1} parent=1 // pred_region
      %65 = dma.done [#allocation6], 2048
    $region41: #{tpu_custom_call.1} parent=1 // pred_fallthru
      _
    %v66 = vld [vmem:[#allocation2] sm:$0xff]
    %v67 = vld [vmem:[#allocation5] sm:$0xff]
    %v68 = vld [vmem:[#allocation5 + $0x8] sm:$0xff]
    %v69 = vld [vmem:[#allocation5 + $0x10] sm:$0xff]
    %v70 = vld [vmem:[#allocation5 + $0x18] sm:$0xff]
    %v71 = vld [vmem:[%s2] sm:$0x1]
    %v73 = vlaneseq
    %v74 = vshrl.u32 %v73, 7
    %v75 = vsub.s32 0, %v74
    %v76 = vrot.slane %v71, %v75
    %vm78 = vcmask 261120
    %v80 = vsel %vm78, %v66, 0
    %82 = vmatprep.subr.mxu0 0.0
    %83 = vmatpush1.msra.mxu0 0.0
    %84 = vmatprep.subr.mxu0 0.0
    %85 = vmatpush1.msra.mxu0 0.0
    %86 = vmatprep.subr.mxu0 0.0
    %87 = vmatpush1.msra.mxu0 0.0
    %88 = vmatprep.subr.mxu0 0.0
    %89 = vmatpush1.msra.mxu0 0.0
    %90 = vmatprep.subr.mxu0 0.0
    %91 = vmatpush1.msra.mxu0 0.0
    %92 = vmatprep.subr.mxu0 0.0
    %93 = vmatpush1.msra.mxu0 0.0
    %94 = vmatprep.subr.mxu0 0.0
    %95 = vmatpush1.msra.mxu0 0.0
    %96 = vmatprep.subr.mxu0 0.0
    %97 = vmatpush1.msra.mxu0 0.0
    %98 = vmatprep.subr.mxu0 0.0
    %99 = vmatpush1.msra.mxu0 0.0
    %100 = vmatprep.subr.mxu0 0.0
    %101 = vmatpush1.msra.mxu0 0.0
    %102 = vmatprep.subr.mxu0 0.0
    %103 = vmatpush1.msra.mxu0 0.0
    %104 = vmatprep.subr.mxu0 0.0
    %105 = vmatpush1.msra.mxu0 0.0
    %106 = vmatprep.subr.mxu0 0.0
    %107 = vmatpush1.msra.mxu0 %v70
    %108 = vmatprep.subr.mxu0 0.0
    %109 = vmatpush1.msra.mxu0 %v69
    %110 = vmatprep.subr.mxu0 0.0
    %111 = vmatpush1.msra.mxu0 %v68
    %112 = vmatprep.subr.mxu0 0.0
    %113 = vmatpush1.msra.mxu0 %v67
    %114 = vmatprep.subr.mxu0 0.0
    %115 = vmatpush2.msra.mxu0 0.0
    %116 = vmatprep.subr.mxu0 0.0
    %117 = vmatpush2.msra.mxu0 0.0
    %118 = vmatprep.subr.mxu0 0.0
    %119 = vmatpush2.msra.mxu0 0.0
    %120 = vmatprep.subr.mxu0 0.0
    %121 = vmatpush2.msra.mxu0 0.0
    %122 = vmatprep.subr.mxu0 0.0
    %123 = vmatpush2.msra.mxu0 0.0
    %124 = vmatprep.subr.mxu0 0.0
    %125 = vmatpush2.msra.mxu0 0.0
    %126 = vmatprep.subr.mxu0 0.0
    %127 = vmatpush2.msra.mxu0 0.0
    %128 = vmatprep.subr.mxu0 0.0
    %129 = vmatpush2.msra.mxu0 0.0
    %130 = vmatprep.subr.mxu0 0.0
    %131 = vmatpush2.msra.mxu0 0.0
    %132 = vmatprep.subr.mxu0 0.0
    %133 = vmatpush2.msra.mxu0 0.0
    %134 = vmatprep.subr.mxu0 0.0
    %135 = vmatpush2.msra.mxu0 0.0
    %136 = vmatprep.subr.mxu0 0.0
    %137 = vmatpush2.msra.mxu0 0.0
    %138 = vmatprep.subr.mxu0 0.0
    %139 = vmatpush2.msra.mxu0 0.0
    %140 = vmatprep.subr.mxu0 0.0
    %141 = vmatpush2.msra.mxu0 0.0
    %142 = vmatprep.subr.mxu0 0.0
    %143 = vmatpush2.msra.mxu0 0.0
    %144 = vmatprep.subr.mxu0 0.0
    %145 = vmatpush2.msra.mxu0 0.0
    %146 = vmatprep.mubr.f32.mxu0 0.0
    %147 = vmatmul.mubr.f32.gmra.mxu0 %v80
    %v148 = vpop.f32.mrf.mxu0
    %v149 = vadd.f32 %v76, %v148
    %v150 = vpop.f32.mrf.mxu0
    %151 = vdwg.mxu0
    %v152 = vmul.f32 %v149, 0.5
    %v153 = vmul.f32 %v149, 0.70710677
    %v154 = verf.f32.pop %v153
    %v155 = vadd.f32 %v154, 1.0
    %v156 = vmul.f32 %v152, %v155
    %v157 = vld [vmem:[%s3] sm:$0x1]
    %v158 = vld [vmem:[%s4] sm:$0x1]
    %159 = vadd.xlane.f32.xlu0 %v156
    %v160 = vpop.xlane.xlu0 %159
    %v161 = vmul.f32 %v156, %v156
    %162 = vadd.xlane.f32.xlu0 %v161
    %v163 = vpop.xlane.xlu0 %162
    %v164 = vmul.f32 %v160, 0.015625
    %v165 = vmul.f32 %v163, 0.015625
    %v166 = vmul.f32 %v164, %v164
    %v167 = vsub.f32 %v165, %v166
    %v168 = vsub.f32 %v156, %v164
    %v169 = vadd.f32 %v167, 1e-05
    %v170 = vrsqrt.pop %v169
    %v171 = vmul.f32 %v168, %v170
    %v173 = vlaneseq
    %v174 = vshrl.u32 %v173, 7
    %v175 = vsub.s32 0, %v174
    %v176 = vrot.slane %v157, %v175
    %v178 = vmul.f32 %v171, %v176
    %v180 = vlaneseq
    %v181 = vshrl.u32 %v180, 7
    %v182 = vsub.s32 0, %v181
    %v183 = vrot.slane %v158, %v182
    %v185 = vadd.f32 %v178, %v183
    %v186 = vld [vmem:[#allocation7] sm:$0xff]
    %v187 = vld [vmem:[#allocation7 + $0x8] sm:$0xff]
    %v188 = vld [vmem:[#allocation7 + $0x10] sm:$0xff]
    %v189 = vld [vmem:[#allocation7 + $0x18] sm:$0xff]
    %v190 = vld [vmem:[#allocation7 + $0x20] sm:$0xff]
    %v191 = vld [vmem:[#allocation7 + $0x28] sm:$0xff]
    %v192 = vld [vmem:[#allocation7 + $0x30] sm:$0xff]
    %v193 = vld [vmem:[#allocation7 + $0x38] sm:$0xff]
    %v194 = vld [vmem:[#allocation7 + $0x40] sm:$0xff]
    %v195 = vld [vmem:[#allocation7 + $0x48] sm:$0xff]
    %v196 = vld [vmem:[#allocation7 + $0x50] sm:$0xff]
    %v197 = vld [vmem:[#allocation7 + $0x58] sm:$0xff]
    %v198 = vld [vmem:[#allocation7 + $0x60] sm:$0xff]
    %v199 = vld [vmem:[#allocation7 + $0x68] sm:$0xff]
    %v200 = vld [vmem:[#allocation7 + $0x70] sm:$0xff]
    %v201 = vld [vmem:[#allocation7 + $0x78] sm:$0xff]
    %v202 = vld [vmem:[%s6] sm:$0x1]
    %v204 = vlaneseq
    %v205 = vshrl.u32 %v204, 7
    %v206 = vsub.s32 0, %v205
    %v207 = vrot.slane %v202, %v206
    %209 = vmatprep.subr.mxu0 0.0
    %210 = vmatpush1.msra.mxu0 %v201
    %211 = vmatprep.subr.mxu0 0.0
    %212 = vmatpush1.msra.mxu0 %v200
    %213 = vmatprep.subr.mxu0 0.0
    %214 = vmatpush1.msra.mxu0 %v199
    %215 = vmatprep.subr.mxu0 0.0
    %216 = vmatpush1.msra.mxu0 %v198
    %217 = vmatprep.subr.mxu0 0.0
    %218 = vmatpush1.msra.mxu0 %v197
    %219 = vmatprep.subr.mxu0 0.0
    %220 = vmatpush1.msra.mxu0 %v196
    %221 = vmatprep.subr.mxu0 0.0
    %222 = vmatpush1.msra.mxu0 %v195
    %223 = vmatprep.subr.mxu0 0.0
    %224 = vmatpush1.msra.mxu0 %v194
    %225 = vmatprep.subr.mxu0 0.0
    %226 = vmatpush1.msra.mxu0 %v193
    %227 = vmatprep.subr.mxu0 0.0
    %228 = vmatpush1.msra.mxu0 %v192
    %229 = vmatprep.subr.mxu0 0.0
    %230 = vmatpush1.msra.mxu0 %v191
    %231 = vmatprep.subr.mxu0 0.0
    %232 = vmatpush1.msra.mxu0 %v190
    %233 = vmatprep.subr.mxu0 0.0
    %234 = vmatpush1.msra.mxu0 %v189
    %235 = vmatprep.subr.mxu0 0.0
    %236 = vmatpush1.msra.mxu0 %v188
    %237 = vmatprep.subr.mxu0 0.0
    %238 = vmatpush1.msra.mxu0 %v187
    %239 = vmatprep.subr.mxu0 0.0
    %240 = vmatpush1.msra.mxu0 %v186
    %241 = vmatprep.subr.mxu0 0.0
    %242 = vmatpush2.msra.mxu0 0.0
    %243 = vmatprep.subr.mxu0 0.0
    %244 = vmatpush2.msra.mxu0 0.0
    %245 = vmatprep.subr.mxu0 0.0
    %246 = vmatpush2.msra.mxu0 0.0
    %247 = vmatprep.subr.mxu0 0.0
    %248 = vmatpush2.msra.mxu0 0.0
    %249 = vmatprep.subr.mxu0 0.0
    %250 = vmatpush2.msra.mxu0 0.0
    %251 = vmatprep.subr.mxu0 0.0
    %252 = vmatpush2.msra.mxu0 0.0
    %253 = vmatprep.subr.mxu0 0.0
    %254 = vmatpush2.msra.mxu0 0.0
    %255 = vmatprep.subr.mxu0 0.0
    %256 = vmatpush2.msra.mxu0 0.0
    %257 = vmatprep.subr.mxu0 0.0
    %258 = vmatpush2.msra.mxu0 0.0
    %259 = vmatprep.subr.mxu0 0.0
    %260 = vmatpush2.msra.mxu0 0.0
    %261 = vmatprep.subr.mxu0 0.0
    %262 = vmatpush2.msra.mxu0 0.0
    %263 = vmatprep.subr.mxu0 0.0
    %264 = vmatpush2.msra.mxu0 0.0
    %265 = vmatprep.subr.mxu0 0.0
    %266 = vmatpush2.msra.mxu0 0.0
    %267 = vmatprep.subr.mxu0 0.0
    %268 = vmatpush2.msra.mxu0 0.0
    %269 = vmatprep.subr.mxu0 0.0
    %270 = vmatpush2.msra.mxu0 0.0
    %271 = vmatprep.subr.mxu0 0.0
    %272 = vmatpush2.msra.mxu0 0.0
    %273 = vmatprep.mubr.f32.mxu0 0.0
    %274 = vmatmul.mubr.f32.gmra.mxu0 %v185
    %v275 = vpop.f32.mrf.mxu0
    %v276 = vadd.f32 %v207, %v275
    %v277 = vpop.f32.mrf.mxu0
    %278 = vdwg.mxu0
    %279 = vst [vmem:[#allocation8] sm:$0xff] %v276
    // Predicated region
    $region42: #{tpu_custom_call.1} parent=1 // pred_check
      _
    $region43: #{tpu_custom_call.1} parent=1 // pred_check_branch
      %281 = sbr.rel (0) target = $region45
    $region44: #{tpu_custom_call.1} parent=1 // pred_region
      %s283 = ssub.s32 128, 128
      %284 = vsyncadd [#allocation4], %s283
      %s286 = sshll.u32 [#allocation8], 4
      %s287 = int_to_ptr.vmem [resolvable:$true] %s286
      %289 = dma.vmem_to_hbm [thread:$0]  %s287, 128, %s7, [#allocation4]
    $region45: #{tpu_custom_call.1} parent=1 // pred_fallthru
      _
    // Predicated region
    $region46: #{tpu_custom_call.1} parent=1 // pred_check
      _
    $region47: #{tpu_custom_call.1} parent=1 // pred_check_branch
      %291 = sbr.rel (0) target = $region49
    $region48: #{tpu_custom_call.1} parent=1 // pred_region
      %292 = dma.done [#allocation4], 128
    $region49: #{tpu_custom_call.1} parent=1 // pred_fallthru
      _
    %293 = vsyncpa [#allocation3], 1
    %294 = vsyncpa [#allocation6], 1
    %295 = vsyncpa [#allocation4], 1

</llo_original>
